<compile_context>
chip_gen: v7x
topology: tpu7x:2x2x1
jax: 0.10.0
libtpu: 0.0.40
codegen_flags: <defaults>
</compile_context>

<pallas_src>
import jax
import jax.numpy as jnp
from jax.experimental import pallas as pl
from jax.experimental.pallas import tpu as pltpu

# Small module-consistent shapes.
B, N, M = 2, 8, 8            # batch, |X| set, |Y| set
DX, DY = 32, 32              # feature dims of X and Y
H, D_OUT = 64, 32            # pair-MLP hidden and output size


def relnet_kernel(x_ref, y_ref, w1y_ref, w1x_ref, b1_ref, w2_ref, b2_ref, o_ref):
    """Single invocation; batch already folded into rows.

    x_ref:(B*N, DX)  y_ref:(B*M, DY)
    w1y:(DY, H) w1x:(DX, H) b1:(1, H)   -- first Linear, split by input halves
    w2:(H, D_OUT) b2:(1, D_OUT)          -- second Linear
    o_ref:(B*N, D_OUT)
    """
    # First Linear, decomposed: pairs @ W1 + b1 = Y@W1y + X@W1x + b1.
    hx = jnp.dot(x_ref[...], w1x_ref[...], preferred_element_type=jnp.float32)            # (B*N, H)
    hy = jnp.dot(y_ref[...], w1y_ref[...],
                 preferred_element_type=jnp.float32) + b1_ref[...]                        # (B*M, H)

    # Pairwise interaction + ReLU + sum over M, per batch element.
    # Static unroll: only sublane slices and sublane-broadcast VPU adds — no MXU,
    # no lane relayouts.
    s_rows = []
    for b in range(B):
        hx_b = hx[b * N:(b + 1) * N]                       # (N, H) static row slice
        s_b = jnp.zeros((N, H), jnp.float32)
        for m in range(M):
            hy_m = hy[b * M + m:b * M + m + 1]             # (1, H) row, broadcast over N
            s_b = s_b + jnp.maximum(hx_b + hy_m, 0.0)
        s_rows.append(s_b)
    s = jnp.concatenate(s_rows, axis=0)                    # (B*N, H) row-axis concat (cheap)

    # Second Linear after the pool:  sum_m(relu(h) @ W2 + b2) == s @ W2 + M*b2.
    out = jnp.dot(s, w2_ref[...], preferred_element_type=jnp.float32) + M * b2_ref[...]   # (B*N, D_OUT)
    o_ref[...] = out.astype(o_ref.dtype)


def relnet_forward(x, y, kparams):
    """x: (B, N, DX), y: (B, M, DY) float32. kparams = (w1y, w1x, b1, w2, b2)."""
    w1y, w1x, b1, w2, b2 = kparams
    x2 = x.reshape(B * N, DX)      # fold batch into rows (metadata-only reshape, outside kernel)
    y2 = y.reshape(B * M, DY)

    def spec(shape):
        return pl.BlockSpec(shape, lambda i: (0, 0))       # full-array block, single grid step

    out = pl.pallas_call(
        relnet_kernel,
        out_shape=jax.ShapeDtypeStruct((B * N, D_OUT), jnp.float32),
        grid=(1,),
        in_specs=[spec(x2.shape), spec(y2.shape), spec(w1y.shape), spec(w1x.shape),
                  spec(b1.shape), spec(w2.shape), spec(b2.shape)],
        out_specs=spec((B * N, D_OUT)),
    )(x2, y2, w1y, w1x, b1, w2, b2)
    return out.reshape(B, N, D_OUT)


def relnet_reference(x, y, params):
    """Pure-JAX mirror of the PyTorch forward (pool='sum', mask=None, equi=False)."""
    yb = jnp.broadcast_to(y[:, None, :, :], (B, N, M, DY))
    xb = jnp.broadcast_to(x[:, :, None, :], (B, N, M, DX))
    pairs = jnp.concatenate([yb, xb], axis=-1)             # (B, N, M, DY+DX), Y-features first
    h = jnp.maximum(pairs @ params["w1"] + params["b1"], 0.0)
    z = h @ params["w2"] + params["b2"]                    # (B, N, M, D_OUT)
    return jnp.sum(z, axis=2)                              # sum pool over M


def init_params(key):
    ks = jax.random.split(key, 4)
    s = 0.1
    return {
        "w1": s * jax.random.normal(ks[0], (DY + DX, H), jnp.float32),   # (in, out)
        "b1": s * jax.random.normal(ks[1], (1, H), jnp.float32),
        "w2": s * jax.random.normal(ks[2], (H, D_OUT), jnp.float32),
        "b2": s * jax.random.normal(ks[3], (1, D_OUT), jnp.float32),
    }


def prepare_kernel_params(params):
    """One-time param prep: split the first Linear into its Y- and X-input halves."""
    w1y = params["w1"][:DY, :]
    w1x = params["w1"][DY:, :]
    return (w1y, w1x, params["b1"], params["w2"], params["b2"])


if __name__ == "__main__":
    key = jax.random.PRNGKey(0)
    kx, ky, kp = jax.random.split(key, 3)
    x = jax.random.normal(kx, (B, N, DX), jnp.float32)
    y = jax.random.normal(ky, (B, M, DY), jnp.float32)
    params = init_params(kp)
    kparams = prepare_kernel_params(params)

    out = relnet_forward(x, y, kparams)
    out = jax.block_until_ready(out)

    ref = relnet_reference(x, y, params)
    assert out.shape == (B, N, D_OUT)
    assert jnp.allclose(out, ref, atol=2e-3, rtol=2e-3), "mismatch vs JAX reference"

    print("KERNEL_OK")
</pallas_src>

<mosaic_0001>
module attributes {stable_mosaic.version = 11 : i64} {
  func.func @relnet_kernel(%arg0: i32, %arg1: memref<16x32xf32, #tpu.memory_space<vmem>>, %arg2: memref<16x32xf32, #tpu.memory_space<vmem>>, %arg3: memref<32x64xf32, #tpu.memory_space<vmem>>, %arg4: memref<32x64xf32, #tpu.memory_space<vmem>>, %arg5: memref<1x64xf32, #tpu.memory_space<vmem>>, %arg6: memref<64x32xf32, #tpu.memory_space<vmem>>, %arg7: memref<1x32xf32, #tpu.memory_space<vmem>>, %arg8: memref<16x32xf32, #tpu.memory_space<vmem>>) attributes {dimension_semantics = [#tpu.dimension_semantics<arbitrary>], iteration_bounds = array<i64: 1>, scalar_prefetch = 0 : i64, scratch_operands = 0 : i64, tpu.core_type = #tpu.core_type<tc>, window_params = [{pipeline_mode = #tpu.pipeline_mode<synchronous>, transform_indices = @transform_0, window_bounds = array<i64: 16, 32>}, {pipeline_mode = #tpu.pipeline_mode<synchronous>, transform_indices = @transform_1, window_bounds = array<i64: 16, 32>}, {pipeline_mode = #tpu.pipeline_mode<synchronous>, transform_indices = @transform_2, window_bounds = array<i64: 32, 64>}, {pipeline_mode = #tpu.pipeline_mode<synchronous>, transform_indices = @transform_3, window_bounds = array<i64: 32, 64>}, {pipeline_mode = #tpu.pipeline_mode<synchronous>, transform_indices = @transform_4, window_bounds = array<i64: 1, 64>}, {pipeline_mode = #tpu.pipeline_mode<synchronous>, transform_indices = @transform_5, window_bounds = array<i64: 64, 32>}, {pipeline_mode = #tpu.pipeline_mode<synchronous>, transform_indices = @transform_6, window_bounds = array<i64: 1, 32>}, {pipeline_mode = #tpu.pipeline_mode<synchronous>, transform_indices = @transform_7, window_bounds = array<i64: 16, 32>}]} {
    %c0 = arith.constant 0 : index
    %c0_0 = arith.constant 0 : index
    %0 = vector.load %arg1[%c0, %c0_0] : memref<16x32xf32, #tpu.memory_space<vmem>>, vector<16x32xf32>
    %c0_1 = arith.constant 0 : index
    %c0_2 = arith.constant 0 : index
    %1 = vector.load %arg4[%c0_1, %c0_2] : memref<32x64xf32, #tpu.memory_space<vmem>>, vector<32x64xf32>
    %cst = arith.constant dense<0.000000e+00> : vector<16x64xf32>
    %2 = tpu.matmul %0, %1, %cst {dimension_numbers = #tpu.dot_dimension_numbers<[1], [0], [0], [1], [0, 0, 1, 1], [], []>} : vector<16x32xf32>, vector<32x64xf32>, vector<16x64xf32> -> vector<16x64xf32>
    %c0_3 = arith.constant 0 : index
    %c0_4 = arith.constant 0 : index
    %3 = vector.load %arg2[%c0_3, %c0_4] : memref<16x32xf32, #tpu.memory_space<vmem>>, vector<16x32xf32>
    %c0_5 = arith.constant 0 : index
    %c0_6 = arith.constant 0 : index
    %4 = vector.load %arg3[%c0_5, %c0_6] : memref<32x64xf32, #tpu.memory_space<vmem>>, vector<32x64xf32>
    %cst_7 = arith.constant dense<0.000000e+00> : vector<16x64xf32>
    %5 = tpu.matmul %3, %4, %cst_7 {dimension_numbers = #tpu.dot_dimension_numbers<[1], [0], [0], [1], [0, 0, 1, 1], [], []>} : vector<16x32xf32>, vector<32x64xf32>, vector<16x64xf32> -> vector<16x64xf32>
    %c0_8 = arith.constant 0 : index
    %c0_9 = arith.constant 0 : index
    %6 = vector.load %arg5[%c0_8, %c0_9] : memref<1x64xf32, #tpu.memory_space<vmem>>, vector<1x64xf32>
    %7 = vector.broadcast %6 : vector<1x64xf32> to vector<16x64xf32>
    %8 = arith.addf %5, %7 : vector<16x64xf32>
    %9 = vector.extract_strided_slice %2 {offsets = [0, 0], sizes = [8, 64], strides = [1, 1]} : vector<16x64xf32> to vector<8x64xf32>
    %cst_10 = arith.constant 0.000000e+00 : f32
    %10 = vector.broadcast %cst_10 : f32 to vector<8x64xf32>
    %11 = vector.extract_strided_slice %8 {offsets = [0, 0], sizes = [1, 64], strides = [1, 1]} : vector<16x64xf32> to vector<1x64xf32>
    %12 = vector.broadcast %11 : vector<1x64xf32> to vector<8x64xf32>
    %13 = arith.addf %9, %12 : vector<8x64xf32>
    %cst_11 = arith.constant 0.000000e+00 : f32
    %14 = vector.broadcast %cst_11 : f32 to vector<8x64xf32>
    %15 = arith.maximumf %13, %14 : vector<8x64xf32>
    %16 = arith.addf %10, %15 : vector<8x64xf32>
    %17 = vector.extract_strided_slice %8 {offsets = [1, 0], sizes = [1, 64], strides = [1, 1]} : vector<16x64xf32> to vector<1x64xf32>
    %18 = vector.broadcast %17 : vector<1x64xf32> to vector<8x64xf32>
    %19 = arith.addf %9, %18 : vector<8x64xf32>
    %cst_12 = arith.constant 0.000000e+00 : f32
    %20 = vector.broadcast %cst_12 : f32 to vector<8x64xf32>
    %21 = arith.maximumf %19, %20 : vector<8x64xf32>
    %22 = arith.addf %16, %21 : vector<8x64xf32>
    %23 = vector.extract_strided_slice %8 {offsets = [2, 0], sizes = [1, 64], strides = [1, 1]} : vector<16x64xf32> to vector<1x64xf32>
    %24 = vector.broadcast %23 : vector<1x64xf32> to vector<8x64xf32>
    %25 = arith.addf %9, %24 : vector<8x64xf32>
    %cst_13 = arith.constant 0.000000e+00 : f32
    %26 = vector.broadcast %cst_13 : f32 to vector<8x64xf32>
    %27 = arith.maximumf %25, %26 : vector<8x64xf32>
    %28 = arith.addf %22, %27 : vector<8x64xf32>
    %29 = vector.extract_strided_slice %8 {offsets = [3, 0], sizes = [1, 64], strides = [1, 1]} : vector<16x64xf32> to vector<1x64xf32>
    %30 = vector.broadcast %29 : vector<1x64xf32> to vector<8x64xf32>
    %31 = arith.addf %9, %30 : vector<8x64xf32>
    %cst_14 = arith.constant 0.000000e+00 : f32
    %32 = vector.broadcast %cst_14 : f32 to vector<8x64xf32>
    %33 = arith.maximumf %31, %32 : vector<8x64xf32>
    %34 = arith.addf %28, %33 : vector<8x64xf32>
    %35 = vector.extract_strided_slice %8 {offsets = [4, 0], sizes = [1, 64], strides = [1, 1]} : vector<16x64xf32> to vector<1x64xf32>
    %36 = vector.broadcast %35 : vector<1x64xf32> to vector<8x64xf32>
    %37 = arith.addf %9, %36 : vector<8x64xf32>
    %cst_15 = arith.constant 0.000000e+00 : f32
    %38 = vector.broadcast %cst_15 : f32 to vector<8x64xf32>
    %39 = arith.maximumf %37, %38 : vector<8x64xf32>
    %40 = arith.addf %34, %39 : vector<8x64xf32>
    %41 = vector.extract_strided_slice %8 {offsets = [5, 0], sizes = [1, 64], strides = [1, 1]} : vector<16x64xf32> to vector<1x64xf32>
    %42 = vector.broadcast %41 : vector<1x64xf32> to vector<8x64xf32>
    %43 = arith.addf %9, %42 : vector<8x64xf32>
    %cst_16 = arith.constant 0.000000e+00 : f32
    %44 = vector.broadcast %cst_16 : f32 to vector<8x64xf32>
    %45 = arith.maximumf %43, %44 : vector<8x64xf32>
    %46 = arith.addf %40, %45 : vector<8x64xf32>
    %47 = vector.extract_strided_slice %8 {offsets = [6, 0], sizes = [1, 64], strides = [1, 1]} : vector<16x64xf32> to vector<1x64xf32>
    %48 = vector.broadcast %47 : vector<1x64xf32> to vector<8x64xf32>
    %49 = arith.addf %9, %48 : vector<8x64xf32>
    %cst_17 = arith.constant 0.000000e+00 : f32
    %50 = vector.broadcast %cst_17 : f32 to vector<8x64xf32>
    %51 = arith.maximumf %49, %50 : vector<8x64xf32>
    %52 = arith.addf %46, %51 : vector<8x64xf32>
    %53 = vector.extract_strided_slice %8 {offsets = [7, 0], sizes = [1, 64], strides = [1, 1]} : vector<16x64xf32> to vector<1x64xf32>
    %54 = vector.broadcast %53 : vector<1x64xf32> to vector<8x64xf32>
    %55 = arith.addf %9, %54 : vector<8x64xf32>
    %cst_18 = arith.constant 0.000000e+00 : f32
    %56 = vector.broadcast %cst_18 : f32 to vector<8x64xf32>
    %57 = arith.maximumf %55, %56 : vector<8x64xf32>
    %58 = arith.addf %52, %57 : vector<8x64xf32>
    %59 = vector.extract_strided_slice %2 {offsets = [8, 0], sizes = [8, 64], strides = [1, 1]} : vector<16x64xf32> to vector<8x64xf32>
    %cst_19 = arith.constant 0.000000e+00 : f32
    %60 = vector.broadcast %cst_19 : f32 to vector<8x64xf32>
    %61 = vector.extract_strided_slice %8 {offsets = [8, 0], sizes = [1, 64], strides = [1, 1]} : vector<16x64xf32> to vector<1x64xf32>
    %62 = vector.broadcast %61 : vector<1x64xf32> to vector<8x64xf32>
    %63 = arith.addf %59, %62 : vector<8x64xf32>
    %cst_20 = arith.constant 0.000000e+00 : f32
    %64 = vector.broadcast %cst_20 : f32 to vector<8x64xf32>
    %65 = arith.maximumf %63, %64 : vector<8x64xf32>
    %66 = arith.addf %60, %65 : vector<8x64xf32>
    %67 = vector.extract_strided_slice %8 {offsets = [9, 0], sizes = [1, 64], strides = [1, 1]} : vector<16x64xf32> to vector<1x64xf32>
    %68 = vector.broadcast %67 : vector<1x64xf32> to vector<8x64xf32>
    %69 = arith.addf %59, %68 : vector<8x64xf32>
    %cst_21 = arith.constant 0.000000e+00 : f32
    %70 = vector.broadcast %cst_21 : f32 to vector<8x64xf32>
    %71 = arith.maximumf %69, %70 : vector<8x64xf32>
    %72 = arith.addf %66, %71 : vector<8x64xf32>
    %73 = vector.extract_strided_slice %8 {offsets = [10, 0], sizes = [1, 64], strides = [1, 1]} : vector<16x64xf32> to vector<1x64xf32>
    %74 = vector.broadcast %73 : vector<1x64xf32> to vector<8x64xf32>
    %75 = arith.addf %59, %74 : vector<8x64xf32>
    %cst_22 = arith.constant 0.000000e+00 : f32
    %76 = vector.broadcast %cst_22 : f32 to vector<8x64xf32>
    %77 = arith.maximumf %75, %76 : vector<8x64xf32>
    %78 = arith.addf %72, %77 : vector<8x64xf32>
    %79 = vector.extract_strided_slice %8 {offsets = [11, 0], sizes = [1, 64], strides = [1, 1]} : vector<16x64xf32> to vector<1x64xf32>
    %80 = vector.broadcast %79 : vector<1x64xf32> to vector<8x64xf32>
    %81 = arith.addf %59, %80 : vector<8x64xf32>
    %cst_23 = arith.constant 0.000000e+00 : f32
    %82 = vector.broadcast %cst_23 : f32 to vector<8x64xf32>
    %83 = arith.maximumf %81, %82 : vector<8x64xf32>
    %84 = arith.addf %78, %83 : vector<8x64xf32>
    %85 = vector.extract_strided_slice %8 {offsets = [12, 0], sizes = [1, 64], strides = [1, 1]} : vector<16x64xf32> to vector<1x64xf32>
    %86 = vector.broadcast %85 : vector<1x64xf32> to vector<8x64xf32>
    %87 = arith.addf %59, %86 : vector<8x64xf32>
    %cst_24 = arith.constant 0.000000e+00 : f32
    %88 = vector.broadcast %cst_24 : f32 to vector<8x64xf32>
    %89 = arith.maximumf %87, %88 : vector<8x64xf32>
    %90 = arith.addf %84, %89 : vector<8x64xf32>
    %91 = vector.extract_strided_slice %8 {offsets = [13, 0], sizes = [1, 64], strides = [1, 1]} : vector<16x64xf32> to vector<1x64xf32>
    %92 = vector.broadcast %91 : vector<1x64xf32> to vector<8x64xf32>
    %93 = arith.addf %59, %92 : vector<8x64xf32>
    %cst_25 = arith.constant 0.000000e+00 : f32
    %94 = vector.broadcast %cst_25 : f32 to vector<8x64xf32>
    %95 = arith.maximumf %93, %94 : vector<8x64xf32>
    %96 = arith.addf %90, %95 : vector<8x64xf32>
    %97 = vector.extract_strided_slice %8 {offsets = [14, 0], sizes = [1, 64], strides = [1, 1]} : vector<16x64xf32> to vector<1x64xf32>
    %98 = vector.broadcast %97 : vector<1x64xf32> to vector<8x64xf32>
    %99 = arith.addf %59, %98 : vector<8x64xf32>
    %cst_26 = arith.constant 0.000000e+00 : f32
    %100 = vector.broadcast %cst_26 : f32 to vector<8x64xf32>
    %101 = arith.maximumf %99, %100 : vector<8x64xf32>
    %102 = arith.addf %96, %101 : vector<8x64xf32>
    %103 = vector.extract_strided_slice %8 {offsets = [15, 0], sizes = [1, 64], strides = [1, 1]} : vector<16x64xf32> to vector<1x64xf32>
    %104 = vector.broadcast %103 : vector<1x64xf32> to vector<8x64xf32>
    %105 = arith.addf %59, %104 : vector<8x64xf32>
    %cst_27 = arith.constant 0.000000e+00 : f32
    %106 = vector.broadcast %cst_27 : f32 to vector<8x64xf32>
    %107 = arith.maximumf %105, %106 : vector<8x64xf32>
    %108 = arith.addf %102, %107 : vector<8x64xf32>
    %109 = tpu.concatenate %58, %108 in 0 : vector<8x64xf32>, vector<8x64xf32> -> vector<16x64xf32>
    %c0_28 = arith.constant 0 : index
    %c0_29 = arith.constant 0 : index
    %110 = vector.load %arg6[%c0_28, %c0_29] : memref<64x32xf32, #tpu.memory_space<vmem>>, vector<64x32xf32>
    %cst_30 = arith.constant dense<0.000000e+00> : vector<16x32xf32>
    %111 = tpu.matmul %109, %110, %cst_30 {dimension_numbers = #tpu.dot_dimension_numbers<[1], [0], [0], [1], [0, 0, 1, 1], [], []>} : vector<16x64xf32>, vector<64x32xf32>, vector<16x32xf32> -> vector<16x32xf32>
    %c0_31 = arith.constant 0 : index
    %c0_32 = arith.constant 0 : index
    %112 = vector.load %arg7[%c0_31, %c0_32] : memref<1x32xf32, #tpu.memory_space<vmem>>, vector<1x32xf32>
    %cst_33 = arith.constant 8.000000e+00 : f32
    %113 = vector.broadcast %cst_33 : f32 to vector<1x32xf32>
    %114 = arith.mulf %113, %112 : vector<1x32xf32>
    %115 = vector.broadcast %114 : vector<1x32xf32> to vector<16x32xf32>
    %116 = arith.addf %111, %115 : vector<16x32xf32>
    %c0_34 = arith.constant 0 : index
    %c0_35 = arith.constant 0 : index
    %117 = vector.load %arg8[%c0_34, %c0_35] : memref<16x32xf32, #tpu.memory_space<vmem>>, vector<16x32xf32>
    tpu.vector_store %arg8[%c0_34, %c0_35], %116 {strides = array<i32>} : memref<16x32xf32, #tpu.memory_space<vmem>>, vector<16x32xf32>,
    return
  }
  func.func @transform_0(%arg0: i32) -> (i32, i32) {
    %c0_i32 = arith.constant 0 : i32
    %c0_i32_0 = arith.constant 0 : i32
    %c0_i32_1 = arith.constant 0 : i32
    return %c0_i32, %c0_i32_0 : i32, i32
  }
  func.func @transform_1(%arg0: i32) -> (i32, i32) {
    %c0_i32 = arith.constant 0 : i32
    %c0_i32_0 = arith.constant 0 : i32
    %c0_i32_1 = arith.constant 0 : i32
    return %c0_i32, %c0_i32_0 : i32, i32
  }
  func.func @transform_2(%arg0: i32) -> (i32, i32) {
    %c0_i32 = arith.constant 0 : i32
    %c0_i32_0 = arith.constant 0 : i32
    %c0_i32_1 = arith.constant 0 : i32
    return %c0_i32, %c0_i32_0 : i32, i32
  }
  func.func @transform_3(%arg0: i32) -> (i32, i32) {
    %c0_i32 = arith.constant 0 : i32
    %c0_i32_0 = arith.constant 0 : i32
    %c0_i32_1 = arith.constant 0 : i32
    return %c0_i32, %c0_i32_0 : i32, i32
  }
  func.func @transform_4(%arg0: i32) -> (i32, i32) {
    %c0_i32 = arith.constant 0 : i32
    %c0_i32_0 = arith.constant 0 : i32
    %c0_i32_1 = arith.constant 0 : i32
    return %c0_i32, %c0_i32_0 : i32, i32
  }
  func.func @transform_5(%arg0: i32) -> (i32, i32) {
    %c0_i32 = arith.constant 0 : i32
    %c0_i32_0 = arith.constant 0 : i32
    %c0_i32_1 = arith.constant 0 : i32
    return %c0_i32, %c0_i32_0 : i32, i32
  }
  func.func @transform_6(%arg0: i32) -> (i32, i32) {
    %c0_i32 = arith.constant 0 : i32
    %c0_i32_0 = arith.constant 0 : i32
    %c0_i32_1 = arith.constant 0 : i32
    return %c0_i32, %c0_i32_0 : i32, i32
  }
  func.func @transform_7(%arg0: i32) -> (i32, i32) {
    %c0_i32 = arith.constant 0 : i32
    %c0_i32_0 = arith.constant 0 : i32
    %c0_i32_1 = arith.constant 0 : i32
    return %c0_i32, %c0_i32_0 : i32, i32
  }
}

</mosaic_0001>

<llo_original>
// kernel: tpu_custom_call.1
$region0: #{tpu_custom_call.1}
  #allocation0 [shape = 'u32[]', space=smem, size = 0x4, offset = 0x4, fixed_abs, tag = 'smem constant byte address 0x4 - core index']
  #allocation1 [shape = 'u32[144,128]{1,0:T(1,128)}', space=vmem, size = 0x12000, scoped, tag = 'internal scratch']
  %s0 = inlined_call_operand.vmem [shape: f32[16,32], index: 0, kind: input, shape index: {}]
  %s1 = inlined_call_operand.vmem [shape: f32[16,32], index: 1, kind: input, shape index: {}]
  %s2 = inlined_call_operand.vmem [shape: f32[32,64], index: 2, kind: input, shape index: {}]
  %s3 = inlined_call_operand.vmem [shape: f32[32,64], index: 3, kind: input, shape index: {}]
  %s4 = inlined_call_operand.vmem [shape: f32[1,64], index: 4, kind: input, shape index: {}]
  %s5 = inlined_call_operand.vmem [shape: f32[64,32], index: 5, kind: input, shape index: {}]
  %s6 = inlined_call_operand.vmem [shape: f32[1,32], index: 6, kind: input, shape index: {}]
  %s7 = inlined_call_operand.hbm [shape: f32[16,32], index: 7, kind: output, shape index: {}]
  %s8 = sld [smem:[#allocation0]]
  $region38: #{tpu_custom_call.1} parent=0
    _
  %s10 = ssub.s32 1, %s8
  %s11 = scalar_select 0, %s10, %s8
  $region1: #{tpu_custom_call.1} parent=0
    #allocation2 [shape = 'u8[8192]{0}', space=vmem, size = 0x2000, scoped, tag = 'output window, operand 0, single buffered']
    #allocation3 [shape = 's32[1]{0}', space=sflag, size = 0x4, scoped, tag = 'scoped memory for tpu_custom_call.1']
    %12 = vsyncpa [#allocation3], 0
    // Predicated region
    $region2: #{tpu_custom_call.1} parent=1 // pred_check
      _
    $region3: #{tpu_custom_call.1} parent=1 // pred_check_branch
      %14 = sbr.rel (0) target = $region5
    $region4: #{tpu_custom_call.1} parent=1 // pred_region
      _
    $region5: #{tpu_custom_call.1} parent=1 // pred_fallthru
      _
    // Predicated region
    $region6: #{tpu_custom_call.1} parent=1 // pred_check
      _
    $region7: #{tpu_custom_call.1} parent=1 // pred_check_branch
      %16 = sbr.rel (0) target = $region9
    $region8: #{tpu_custom_call.1} parent=1 // pred_region
      _
    $region9: #{tpu_custom_call.1} parent=1 // pred_fallthru
      _
    // Predicated region
    $region10: #{tpu_custom_call.1} parent=1 // pred_check
      _
    $region11: #{tpu_custom_call.1} parent=1 // pred_check_branch
      %18 = sbr.rel (0) target = $region13
    $region12: #{tpu_custom_call.1} parent=1 // pred_region
      _
    $region13: #{tpu_custom_call.1} parent=1 // pred_fallthru
      _
    // Predicated region
    $region14: #{tpu_custom_call.1} parent=1 // pred_check
      _
    $region15: #{tpu_custom_call.1} parent=1 // pred_check_branch
      %20 = sbr.rel (0) target = $region17
    $region16: #{tpu_custom_call.1} parent=1 // pred_region
      _
    $region17: #{tpu_custom_call.1} parent=1 // pred_fallthru
      _
    // Predicated region
    $region18: #{tpu_custom_call.1} parent=1 // pred_check
      _
    $region19: #{tpu_custom_call.1} parent=1 // pred_check_branch
      %22 = sbr.rel (0) target = $region21
    $region20: #{tpu_custom_call.1} parent=1 // pred_region
      _
    $region21: #{tpu_custom_call.1} parent=1 // pred_fallthru
      _
    // Predicated region
    $region22: #{tpu_custom_call.1} parent=1 // pred_check
      _
    $region23: #{tpu_custom_call.1} parent=1 // pred_check_branch
      %24 = sbr.rel (0) target = $region25
    $region24: #{tpu_custom_call.1} parent=1 // pred_region
      _
    $region25: #{tpu_custom_call.1} parent=1 // pred_fallthru
      _
    // Predicated region
    $region26: #{tpu_custom_call.1} parent=1 // pred_check
      _
    $region27: #{tpu_custom_call.1} parent=1 // pred_check_branch
      %26 = sbr.rel (0) target = $region29
    $region28: #{tpu_custom_call.1} parent=1 // pred_region
      _
    $region29: #{tpu_custom_call.1} parent=1 // pred_fallthru
      _
    %v27 = vld [vmem:[%s0] sm:$0xff]
    %v28 = vld [vmem:[%s0 + $0x8] sm:$0xff]
    %v29 = vld [vmem:[%s3] sm:$0xff]
    %v30 = vld [vmem:[%s3 + $0x8] sm:$0xff]
    %v31 = vld [vmem:[%s3 + $0x10] sm:$0xff]
    %v32 = vld [vmem:[%s3 + $0x18] sm:$0xff]
    %vm33 = vcmask 261120
    %v35 = vsel %vm33, %v27, 0
    %v38 = vsel %vm33, %v28, 0
    %40 = vmatprep.subr.mxu0 0.0
    %41 = vmatpush1.msra.mxu0 %v29
    %42 = vmatprep.subr.mxu0 0.0
    %43 = vmatpush1.msra.mxu0 %v30
    %44 = vmatprep.subr.mxu0 0.0
    %45 = vmatpush1.msra.mxu0 %v31
    %46 = vmatprep.subr.mxu0 0.0
    %47 = vmatpush1.msra.mxu0 %v32
    %48 = vmatprep.subr.mxu0 0.0
    %49 = vmatpush1.msra.mxu0 0.0
    %50 = vmatprep.subr.mxu0 0.0
    %51 = vmatpush1.msra.mxu0 0.0
    %52 = vmatprep.subr.mxu0 0.0
    %53 = vmatpush1.msra.mxu0 0.0
    %54 = vmatprep.subr.mxu0 0.0
    %55 = vmatpush1.msra.mxu0 0.0
    %56 = vmatprep.subr.mxu0 0.0
    %57 = vmatpush1.msra.mxu0 0.0
    %58 = vmatprep.subr.mxu0 0.0
    %59 = vmatpush1.msra.mxu0 0.0
    %60 = vmatprep.subr.mxu0 0.0
    %61 = vmatpush1.msra.mxu0 0.0
    %62 = vmatprep.subr.mxu0 0.0
    %63 = vmatpush1.msra.mxu0 0.0
    %64 = vmatprep.subr.mxu0 0.0
    %65 = vmatpush1.msra.mxu0 0.0
    %66 = vmatprep.subr.mxu0 0.0
    %67 = vmatpush1.msra.mxu0 0.0
    %68 = vmatprep.subr.mxu0 0.0
    %69 = vmatpush1.msra.mxu0 0.0
    %70 = vmatprep.subr.mxu0 0.0
    %71 = vmatpush1.msra.mxu0 0.0
    %72 = vmatprep.subr.mxu0 0.0
    %73 = vmatpush1.msra.mxu0 0.0
    %74 = vmatprep.subr.mxu0 0.0
    %75 = vmatpush1.msra.mxu0 0.0
    %76 = vmatprep.subr.mxu0 0.0
    %77 = vmatpush1.msra.mxu0 0.0
    %78 = vmatprep.subr.mxu0 0.0
    %79 = vmatpush1.msra.mxu0 0.0
    %80 = vmatprep.subr.mxu0 0.0
    %81 = vmatpush1.msra.mxu0 0.0
    %82 = vmatprep.subr.mxu0 0.0
    %83 = vmatpush1.msra.mxu0 0.0
    %84 = vmatprep.subr.mxu0 0.0
    %85 = vmatpush1.msra.mxu0 0.0
    %86 = vmatprep.subr.mxu0 0.0
    %87 = vmatpush1.msra.mxu0 0.0
    %88 = vmatprep.subr.mxu0 0.0
    %89 = vmatpush1.msra.mxu0 0.0
    %90 = vmatprep.subr.mxu0 0.0
    %91 = vmatpush1.msra.mxu0 0.0
    %92 = vmatprep.subr.mxu0 0.0
    %93 = vmatpush1.msra.mxu0 0.0
    %94 = vmatprep.subr.mxu0 0.0
    %95 = vmatpush1.msra.mxu0 0.0
    %96 = vmatprep.subr.mxu0 0.0
    %97 = vmatpush1.msra.mxu0 0.0
    %98 = vmatprep.subr.mxu0 0.0
    %99 = vmatpush1.msra.mxu0 0.0
    %100 = vmatprep.subr.mxu0 0.0
    %101 = vmatpush1.msra.mxu0 0.0
    %102 = vmatprep.subr.mxu0 0.0
    %103 = vmatpush1.msra.mxu0 0.0
    %104 = vmatprep.mubr.f32.mxu0 0.0
    %105 = vmatmul.mubr.f32.gmra.mrb[0].mxu0 %v35
    %v106 = vpop.f32.mrb[0].mxu0
    %v107 = vadd.f32 0.0, %v106
    %v108 = vpop.f32.mrb[0].mxu0
    %109 = vmatprep.mubr.f32.mxu0 0.0
    %110 = vmatmul.mubr.f32.gmra.mrb[0].mxu0 %v38
    %v111 = vpop.f32.mrb[0].mxu0
    %v112 = vadd.f32 0.0, %v111
    %v113 = vpop.f32.mrb[0].mxu0
    %114 = vdwg.mxu0
    %v115 = vld [vmem:[%s1] sm:$0xff]
    %v116 = vld [vmem:[%s1 + $0x8] sm:$0xff]
    %v117 = vld [vmem:[%s2] sm:$0xff]
    %v118 = vld [vmem:[%s2 + $0x8] sm:$0xff]
    %v119 = vld [vmem:[%s2 + $0x10] sm:$0xff]
    %v120 = vld [vmem:[%s2 + $0x18] sm:$0xff]
    %v121 = vld [vmem:[%s4] sm:$0x1]
    %v123 = vlaneseq
    %v124 = vshrl.u32 %v123, 7
    %v125 = vsub.s32 0, %v124
    %v126 = vrot.slane %v121, %v125
    %v129 = vsel %vm33, %v115, 0
    %v132 = vsel %vm33, %v116, 0
    %134 = vmatprep.subr.mxu0 0.0
    %135 = vmatpush1.msra.mxu0 %v117
    %136 = vmatprep.subr.mxu0 0.0
    %137 = vmatpush1.msra.mxu0 %v118
    %138 = vmatprep.subr.mxu0 0.0
    %139 = vmatpush1.msra.mxu0 %v119
    %140 = vmatprep.subr.mxu0 0.0
    %141 = vmatpush1.msra.mxu0 %v120
    %142 = vmatprep.subr.mxu0 0.0
    %143 = vmatpush1.msra.mxu0 0.0
    %144 = vmatprep.subr.mxu0 0.0
    %145 = vmatpush1.msra.mxu0 0.0
    %146 = vmatprep.subr.mxu0 0.0
    %147 = vmatpush1.msra.mxu0 0.0
    %148 = vmatprep.subr.mxu0 0.0
    %149 = vmatpush1.msra.mxu0 0.0
    %150 = vmatprep.subr.mxu0 0.0
    %151 = vmatpush1.msra.mxu0 0.0
    %152 = vmatprep.subr.mxu0 0.0
    %153 = vmatpush1.msra.mxu0 0.0
    %154 = vmatprep.subr.mxu0 0.0
    %155 = vmatpush1.msra.mxu0 0.0
    %156 = vmatprep.subr.mxu0 0.0
    %157 = vmatpush1.msra.mxu0 0.0
    %158 = vmatprep.subr.mxu0 0.0
    %159 = vmatpush1.msra.mxu0 0.0
    %160 = vmatprep.subr.mxu0 0.0
    %161 = vmatpush1.msra.mxu0 0.0
    %162 = vmatprep.subr.mxu0 0.0
    %163 = vmatpush1.msra.mxu0 0.0
    %164 = vmatprep.subr.mxu0 0.0
    %165 = vmatpush1.msra.mxu0 0.0
    %166 = vmatprep.subr.mxu0 0.0
    %167 = vmatpush1.msra.mxu0 0.0
    %168 = vmatprep.subr.mxu0 0.0
    %169 = vmatpush1.msra.mxu0 0.0
    %170 = vmatprep.subr.mxu0 0.0
    %171 = vmatpush1.msra.mxu0 0.0
    %172 = vmatprep.subr.mxu0 0.0
    %173 = vmatpush1.msra.mxu0 0.0
    %174 = vmatprep.subr.mxu0 0.0
    %175 = vmatpush1.msra.mxu0 0.0
    %176 = vmatprep.subr.mxu0 0.0
    %177 = vmatpush1.msra.mxu0 0.0
    %178 = vmatprep.subr.mxu0 0.0
    %179 = vmatpush1.msra.mxu0 0.0
    %180 = vmatprep.subr.mxu0 0.0
    %181 = vmatpush1.msra.mxu0 0.0
    %182 = vmatprep.subr.mxu0 0.0
    %183 = vmatpush1.msra.mxu0 0.0
    %184 = vmatprep.subr.mxu0 0.0
    %185 = vmatpush1.msra.mxu0 0.0
    %186 = vmatprep.subr.mxu0 0.0
    %187 = vmatpush1.msra.mxu0 0.0
    %188 = vmatprep.subr.mxu0 0.0
    %189 = vmatpush1.msra.mxu0 0.0
    %190 = vmatprep.subr.mxu0 0.0
    %191 = vmatpush1.msra.mxu0 0.0
    %192 = vmatprep.subr.mxu0 0.0
    %193 = vmatpush1.msra.mxu0 0.0
    %194 = vmatprep.subr.mxu0 0.0
    %195 = vmatpush1.msra.mxu0 0.0
    %196 = vmatprep.subr.mxu0 0.0
    %197 = vmatpush1.msra.mxu0 0.0
    %198 = vmatprep.mubr.f32.mxu0 0.0
    %199 = vmatmul.mubr.f32.gmra.mrb[0].mxu0 %v129
    %v200 = vpop.f32.mrb[0].mxu0
    %v201 = vadd.f32 %v126, %v200
    %v202 = vpop.f32.mrb[0].mxu0
    %203 = vmatprep.mubr.f32.mxu0 0.0
    %204 = vmatmul.mubr.f32.gmra.mrb[0].mxu0 %v132
    %v205 = vpop.f32.mrb[0].mxu0
    %v206 = vadd.f32 %v126, %v205
    %v207 = vpop.f32.mrb[0].mxu0
    %208 = vdwg.mxu0
    %v209 = vlaneseq
    %v210 = vshrl.u32 %v209, 7
    %v211 = vsub.s32 0, %v210
    %v212 = vrot.slane %v201, %v211
    %v213 = vadd.f32 %v107, %v212
    %v214 = vmax.f32 %v213, 0.0
    %v215 = vadd.f32 %v214, 0.0
    %v216 = vlaneseq
    %v217 = vshrl.u32 %v216, 7
    %v218 = vsub.s32 1, %v217
    %v219 = vrot.slane %v201, %v218
    %v220 = vadd.f32 %v107, %v219
    %v221 = vmax.f32 %v220, 0.0
    %v222 = vadd.f32 %v215, %v221
    %v223 = vlaneseq
    %v224 = vshrl.u32 %v223, 7
    %v225 = vsub.s32 2, %v224
    %v226 = vrot.slane %v201, %v225
    %v227 = vadd.f32 %v107, %v226
    %v228 = vmax.f32 %v227, 0.0
    %v229 = vadd.f32 %v222, %v228
    %v230 = vlaneseq
    %v231 = vshrl.u32 %v230, 7
    %v232 = vsub.s32 3, %v231
    %v233 = vrot.slane %v201, %v232
    %v234 = vadd.f32 %v107, %v233
    %v235 = vmax.f32 %v234, 0.0
    %v236 = vadd.f32 %v229, %v235
    %v237 = vlaneseq
    %v238 = vshrl.u32 %v237, 7
    %v239 = vsub.s32 4, %v238
    %v240 = vrot.slane %v201, %v239
    %v241 = vadd.f32 %v107, %v240
    %v242 = vmax.f32 %v241, 0.0
    %v243 = vadd.f32 %v236, %v242
    %v244 = vlaneseq
    %v245 = vshrl.u32 %v244, 7
    %v246 = vsub.s32 5, %v245
    %v247 = vrot.slane %v201, %v246
    %v248 = vadd.f32 %v107, %v247
    %v249 = vmax.f32 %v248, 0.0
    %v250 = vadd.f32 %v243, %v249
    %v251 = vlaneseq
    %v252 = vshrl.u32 %v251, 7
    %v253 = vsub.s32 6, %v252
    %v254 = vrot.slane %v201, %v253
    %v255 = vadd.f32 %v107, %v254
    %v256 = vmax.f32 %v255, 0.0
    %v257 = vadd.f32 %v250, %v256
    %v258 = vlaneseq
    %v259 = vshrl.u32 %v258, 7
    %v260 = vsub.s32 7, %v259
    %v261 = vrot.slane %v201, %v260
    %v262 = vadd.f32 %v107, %v261
    %v263 = vmax.f32 %v262, 0.0
    %v264 = vadd.f32 %v257, %v263
    %v265 = vlaneseq
    %v266 = vshrl.u32 %v265, 7
    %v267 = vsub.s32 0, %v266
    %v268 = vrot.slane %v206, %v267
    %v269 = vadd.f32 %v112, %v268
    %v270 = vmax.f32 %v269, 0.0
    %v271 = vadd.f32 %v270, 0.0
    %v272 = vlaneseq
    %v273 = vshrl.u32 %v272, 7
    %v274 = vsub.s32 1, %v273
    %v275 = vrot.slane %v206, %v274
    %v276 = vadd.f32 %v112, %v275
    %v277 = vmax.f32 %v276, 0.0
    %v278 = vadd.f32 %v271, %v277
    %v279 = vlaneseq
    %v280 = vshrl.u32 %v279, 7
    %v281 = vsub.s32 2, %v280
    %v282 = vrot.slane %v206, %v281
    %v283 = vadd.f32 %v112, %v282
    %v284 = vmax.f32 %v283, 0.0
    %v285 = vadd.f32 %v278, %v284
    %v286 = vlaneseq
    %v287 = vshrl.u32 %v286, 7
    %v288 = vsub.s32 3, %v287
    %v289 = vrot.slane %v206, %v288
    %v290 = vadd.f32 %v112, %v289
    %v291 = vmax.f32 %v290, 0.0
    %v292 = vadd.f32 %v285, %v291
    %v293 = vlaneseq
    %v294 = vshrl.u32 %v293, 7
    %v295 = vsub.s32 4, %v294
    %v296 = vrot.slane %v206, %v295
    %v297 = vadd.f32 %v112, %v296
    %v298 = vmax.f32 %v297, 0.0
    %v299 = vadd.f32 %v292, %v298
    %v300 = vlaneseq
    %v301 = vshrl.u32 %v300, 7
    %v302 = vsub.s32 5, %v301
    %v303 = vrot.slane %v206, %v302
    %v304 = vadd.f32 %v112, %v303
    %v305 = vmax.f32 %v304, 0.0
    %v306 = vadd.f32 %v299, %v305
    %v307 = vlaneseq
    %v308 = vshrl.u32 %v307, 7
    %v309 = vsub.s32 6, %v308
    %v310 = vrot.slane %v206, %v309
    %v311 = vadd.f32 %v112, %v310
    %v312 = vmax.f32 %v311, 0.0
    %v313 = vadd.f32 %v306, %v312
    %v314 = vlaneseq
    %v315 = vshrl.u32 %v314, 7
    %v316 = vsub.s32 7, %v315
    %v317 = vrot.slane %v206, %v316
    %v318 = vadd.f32 %v112, %v317
    %v319 = vmax.f32 %v318, 0.0
    %v320 = vadd.f32 %v313, %v319
    %v321 = vld [vmem:[%s5] sm:$0xff]
    %v322 = vld [vmem:[%s5 + $0x8] sm:$0xff]
    %v323 = vld [vmem:[%s5 + $0x10] sm:$0xff]
    %v324 = vld [vmem:[%s5 + $0x18] sm:$0xff]
    %v325 = vld [vmem:[%s5 + $0x20] sm:$0xff]
    %v326 = vld [vmem:[%s5 + $0x28] sm:$0xff]
    %v327 = vld [vmem:[%s5 + $0x30] sm:$0xff]
    %v328 = vld [vmem:[%s5 + $0x38] sm:$0xff]
    %v329 = vld [vmem:[%s6] sm:$0x1]
    %v330 = vmul.f32 %v329, 8.0
    %v332 = vlaneseq
    %v333 = vshrl.u32 %v332, 7
    %v334 = vsub.s32 0, %v333
    %v335 = vrot.slane %v330, %v334
    %vm337 = vcmask 523264
    %v339 = vsel %vm337, %v264, 0
    %v342 = vsel %vm337, %v320, 0
    %344 = vmatprep.subr.mxu0 0.0
    %345 = vmatpush1.msra.mxu0 %v321
    %346 = vmatprep.subr.mxu0 0.0
    %347 = vmatpush1.msra.mxu0 %v322
    %348 = vmatprep.subr.mxu0 0.0
    %349 = vmatpush1.msra.mxu0 %v323
    %350 = vmatprep.subr.mxu0 0.0
    %351 = vmatpush1.msra.mxu0 %v324
    %352 = vmatprep.subr.mxu0 0.0
    %353 = vmatpush1.msra.mxu0 %v325
    %354 = vmatprep.subr.mxu0 0.0
    %355 = vmatpush1.msra.mxu0 %v326
    %356 = vmatprep.subr.mxu0 0.0
    %357 = vmatpush1.msra.mxu0 %v327
    %358 = vmatprep.subr.mxu0 0.0
    %359 = vmatpush1.msra.mxu0 %v328
    %360 = vmatprep.subr.mxu0 0.0
    %361 = vmatpush1.msra.mxu0 0.0
    %362 = vmatprep.subr.mxu0 0.0
    %363 = vmatpush1.msra.mxu0 0.0
    %364 = vmatprep.subr.mxu0 0.0
    %365 = vmatpush1.msra.mxu0 0.0
    %366 = vmatprep.subr.mxu0 0.0
    %367 = vmatpush1.msra.mxu0 0.0
    %368 = vmatprep.subr.mxu0 0.0
    %369 = vmatpush1.msra.mxu0 0.0
    %370 = vmatprep.subr.mxu0 0.0
    %371 = vmatpush1.msra.mxu0 0.0
    %372 = vmatprep.subr.mxu0 0.0
    %373 = vmatpush1.msra.mxu0 0.0
    %374 = vmatprep.subr.mxu0 0.0
    %375 = vmatpush1.msra.mxu0 0.0
    %376 = vmatprep.subr.mxu0 0.0
    %377 = vmatpush1.msra.mxu0 0.0
    %378 = vmatprep.subr.mxu0 0.0
    %379 = vmatpush1.msra.mxu0 0.0
    %380 = vmatprep.subr.mxu0 0.0
    %381 = vmatpush1.msra.mxu0 0.0
    %382 = vmatprep.subr.mxu0 0.0
    %383 = vmatpush1.msra.mxu0 0.0
    %384 = vmatprep.subr.mxu0 0.0
    %385 = vmatpush1.msra.mxu0 0.0
    %386 = vmatprep.subr.mxu0 0.0
    %387 = vmatpush1.msra.mxu0 0.0
    %388 = vmatprep.subr.mxu0 0.0
    %389 = vmatpush1.msra.mxu0 0.0
    %390 = vmatprep.subr.mxu0 0.0
    %391 = vmatpush1.msra.mxu0 0.0
    %392 = vmatprep.subr.mxu0 0.0
    %393 = vmatpush1.msra.mxu0 0.0
    %394 = vmatprep.subr.mxu0 0.0
    %395 = vmatpush1.msra.mxu0 0.0
    %396 = vmatprep.subr.mxu0 0.0
    %397 = vmatpush1.msra.mxu0 0.0
    %398 = vmatprep.subr.mxu0 0.0
    %399 = vmatpush1.msra.mxu0 0.0
    %400 = vmatprep.subr.mxu0 0.0
    %401 = vmatpush1.msra.mxu0 0.0
    %402 = vmatprep.subr.mxu0 0.0
    %403 = vmatpush1.msra.mxu0 0.0
    %404 = vmatprep.subr.mxu0 0.0
    %405 = vmatpush1.msra.mxu0 0.0
    %406 = vmatprep.subr.mxu0 0.0
    %407 = vmatpush1.msra.mxu0 0.0
    %408 = vmatprep.mubr.f32.mxu0 0.0
    %409 = vmatmul.mubr.f32.gmra.mrb[0].mxu0 %v339
    %v410 = vpop.f32.mrb[0].mxu0
    %v411 = vadd.f32 %v335, %v410
    %v412 = vpop.f32.mrb[0].mxu0
    %413 = vmatprep.mubr.f32.mxu0 0.0
    %414 = vmatmul.mubr.f32.gmra.mrb[0].mxu0 %v342
    %v415 = vpop.f32.mrb[0].mxu0
    %v416 = vadd.f32 %v335, %v415
    %v417 = vpop.f32.mrb[0].mxu0
    %418 = vdwg.mxu0
    %419 = vst.msk [vmem:[#allocation2] sm:$0xff] %vm33, %v411
    %420 = vst.msk [vmem:[#allocation2 + $0x8] sm:$0xff] %vm33, %v416
    // Predicated region
    $region30: #{tpu_custom_call.1} parent=1 // pred_check
      _
    $region31: #{tpu_custom_call.1} parent=1 // pred_check_branch
      %422 = sbr.rel (0) target = $region33
    $region32: #{tpu_custom_call.1} parent=1 // pred_region
      %s424 = ssub.s32 256, 256
      %425 = vsyncadd [#allocation3], %s424
      %s426 = sshll.u32 [#allocation2], 4
      %s427 = int_to_ptr.vmem [resolvable:$true] %s426
      %432 = dma.vmem_to_hbm [thread:$0]  %s427, 256, %s7, [#allocation3], 128, 128, 8
    $region33: #{tpu_custom_call.1} parent=1 // pred_fallthru
      _
    // Predicated region
    $region34: #{tpu_custom_call.1} parent=1 // pred_check
      _
    $region35: #{tpu_custom_call.1} parent=1 // pred_check_branch
      %434 = sbr.rel (0) target = $region37
    $region36: #{tpu_custom_call.1} parent=1 // pred_region
      %435 = dma.done [#allocation3], 256
    $region37: #{tpu_custom_call.1} parent=1 // pred_fallthru
      _
    %436 = vsyncpa [#allocation3], 1

</llo_original>
